<compile_context>
chip_gen: v6e
topology: v6e:2x2x1
jax: 0.10.0
libtpu: 0.0.40
codegen_flags: <defaults>
</compile_context>

<pallas_src>
import functools

import jax
import jax.numpy as jnp
from jax.experimental import pallas as pl
from jax.experimental.pallas import tpu as pltpu


def _round_up(x, m):
    return ((x + m - 1) // m) * m


def _cdiv(a, b):
    return -(-a // b)


def _matmul_kernel(a_ref, w_ref, o_ref, acc_ref):
    # a_ref: (tm, tk) im2col rows, w_ref: (tk, tn) weights, o_ref: (tm, tn).
    k = pl.program_id(2)

    @pl.when(k == 0)
    def _():
        acc_ref[...] = jnp.zeros_like(acc_ref)

    acc_ref[...] += jnp.dot(
        a_ref[...], w_ref[...], preferred_element_type=jnp.float32
    )

    @pl.when(k == pl.num_programs(2) - 1)
    def _():
        o_ref[...] = acc_ref[...].astype(o_ref.dtype)


def _choose_tiles(M, K, Cout, in_itemsize, out_itemsize):
    """Pick (tm, tk, tn, Kp, Cout_p) from an explicit VMEM budget.

    Budget covers double-buffered A/W/out tiles plus the f32 accumulator and
    is chosen to fit v5e's 16 MiB scoped default (and hence v6e/v7x too).
    """
    budget = 12 * 2**20

    # Cout tile: keep the true width when narrow (avoids 16x output-write
    # amplification for e.g. Cout=8); lane-align only when already wide.
    if Cout < 128:
        tn, cout_p = Cout, Cout
    else:
        cout_p = _round_up(Cout, 128)
        tn = cout_p if cout_p <= 512 else 256
        cout_p = _round_up(cout_p, tn)

    # K tile: full contraction when small (no pad-to-128 traffic inflation);
    # lane-aligned 512-wide tiles + accumulator otherwise.
    if K <= 1024:
        tk, kp = K, K
    else:
        tk = 512
        kp = _round_up(K, tk)

    # M tile from the remaining budget.  For moderate M force >= 2 tiles so a
    # "parallel" grid axis can keep both v7x TensorCores busy.
    w_bytes = 2 * tk * tn * in_itemsize                # double-buffered weight
    per_row = (2 * tk * in_itemsize                    # double-buffered A row
               + 2 * tn * out_itemsize                 # double-buffered out row
               + tn * 4)                               # f32 accumulator row
    tm_max = max(8, ((budget - w_bytes) // per_row) // 8 * 8)
    tm_max = min(tm_max, 1024)

    if M <= 256:
        tm = _round_up(M, 8)
    else:
        tm = min(_round_up(_cdiv(M, 2), 8), tm_max)

    return tm, tk, tn, kp, cout_p


@functools.partial(jax.jit, static_argnames=("stride", "compute_dtype"))
def conv2d_pallas(x_nchw, weight_oihw, *, stride=1, compute_dtype="bfloat16"):
    """Equivalent of nn.Conv2d(nIn, nOut, k, stride, padding=(k-1)//2, bias=False)."""
    compute_dtype = jnp.dtype(compute_dtype)
    N, Cin, H, W = x_nchw.shape
    Cout, Cin_w, kH, kW = weight_oihw.shape
    assert Cin == Cin_w
    assert kH == kW, "module C always builds a square kernel"
    assert kH % 2 == 1, "module C's same-padding convention assumes odd kSize"
    pad = (kH - 1) // 2

    Ho = (H + 2 * pad - kH) // stride + 1
    Wo = (W + 2 * pad - kW) // stride + 1

    # ---------------- glue (plain JAX): layout + im2col ----------------
    # NCHW -> NHWC (channels on the lane axis), pad spatially.  These layout
    # ops fuse with the tap slices below in XLA.
    x_nhwc = jnp.transpose(x_nchw, (0, 2, 3, 1))
    x_sp = jnp.pad(x_nhwc, ((0, 0), (pad, pad), (pad, pad), (0, 0)))

    # Tap extraction + stride decimation done ONCE here (strided sublane
    # slices inside the kernel would cost an XLU relayout per tap).
    patches = []
    for kh in range(kH):
        for kw in range(kW):
            patches.append(
                jax.lax.slice(
                    x_sp,
                    (0, kh, kw, 0),
                    (N,
                     kh + (Ho - 1) * stride + 1,
                     kw + (Wo - 1) * stride + 1,
                     Cin),
                    (1, stride, stride, 1),
                )  # (N, Ho, Wo, Cin)
            )
    K = kH * kW * Cin
    M = N * Ho * Wo
    cols = jnp.concatenate(patches, axis=-1).reshape(M, K)

    # Weight OIHW -> (kH, kW, Cin, Cout) -> (K, Cout); channel-major order
    # matches the im2col concat order.
    w_mat = jnp.transpose(weight_oihw, (2, 3, 1, 0)).reshape(K, Cout)

    out_dtype = x_nchw.dtype
    in_isz = compute_dtype.itemsize
    out_isz = jnp.dtype(out_dtype).itemsize
    tm, tk, tn, Kp, Cout_p = _choose_tiles(M, K, Cout, in_isz, out_isz)
    Mp = _round_up(M, tm)

    if Kp > K or Cout_p > Cout:
        w_mat = jnp.pad(w_mat, ((0, Kp - K), (0, Cout_p - Cout)))
    if Mp > M or Kp > K:
        cols = jnp.pad(cols, ((0, Mp - M), (0, Kp - K)))

    # bf16 operands hit the MXU fast path on v6e/v7x and halve im2col DMA
    # bytes; accumulation stays in f32 inside the kernel.
    cols = cols.astype(compute_dtype)
    w_mat = w_mat.astype(compute_dtype)

    grid = (Mp // tm, Cout_p // tn, Kp // tk)

    # True (unpadded) work for XLA's scheduler.
    cost = pl.CostEstimate(
        flops=2 * M * K * Cout,
        transcendentals=0,
        bytes_accessed=(M * K + K * Cout) * in_isz + M * Cout * out_isz,
    )

    # Explicit VMEM budget: double-buffered A/W/out tiles + f32 accumulator.
    # NOTE: the weight is double-buffered even when its block index is
    # constant; the budget above already accounts for that 2x.
    est = (2 * tm * tk * in_isz + 2 * tk * tn * in_isz
           + 2 * tm * tn * out_isz + tm * tn * 4)
    vmem_limit = int(min(max(2 * est, 32 * 2**20), 48 * 2**20))

    out_flat = pl.pallas_call(
        _matmul_kernel,
        out_shape=jax.ShapeDtypeStruct((Mp, Cout_p), out_dtype),
        grid_spec=pltpu.PrefetchScalarGridSpec(
            num_scalar_prefetch=0,
            grid=grid,
            in_specs=[
                pl.BlockSpec((tm, tk), lambda i, j, k: (i, k)),
                pl.BlockSpec((tk, tn), lambda i, j, k: (k, j)),
            ],
            out_specs=pl.BlockSpec((tm, tn), lambda i, j, k: (i, j)),
            scratch_shapes=[pltpu.VMEM((tm, tn), jnp.float32)],
        ),
        compiler_params=pltpu.CompilerParams(
            dimension_semantics=("parallel", "parallel", "arbitrary"),
            vmem_limit_bytes=vmem_limit,
        ),
        cost_estimate=cost,
    )(cols, w_mat)

    # Strip padding only if any was added, restore (N, Ho, Wo, Cout), back to
    # NCHW to match the PyTorch module boundary.
    if Mp > M or Cout_p > Cout:
        out_flat = out_flat[:M, :Cout]
    out_nhwc = out_flat.reshape(N, Ho, Wo, Cout)
    return jnp.transpose(out_nhwc, (0, 3, 1, 2))


if __name__ == "__main__":
    # Small shapes consistent with the module: batch=2, nIn=4, nOut=8, 16x16, k=3.
    N, nIn, nOut, H, W, kSize, stride = 2, 4, 8, 16, 16, 3, 1

    key = jax.random.PRNGKey(0)
    kx, kw = jax.random.split(key)
    x = jax.random.normal(kx, (N, nIn, H, W), dtype=jnp.float32)
    # PyTorch Conv2d weight layout: OIHW.
    weight = jax.random.normal(kw, (nOut, nIn, kSize, kSize), dtype=jnp.float32) * 0.1

    # Reference: XLA conv with the same semantics as nn.Conv2d(bias=False).
    pad = (kSize - 1) // 2
    ref = jax.lax.conv_general_dilated(
        x, weight,
        window_strides=(stride, stride),
        padding=((pad, pad), (pad, pad)),
        dimension_numbers=("NCHW", "OIHW", "NCHW"),
    )

    # float32 operand path (tight tolerance vs. the f32 XLA reference).
    out_f32 = jax.block_until_ready(
        conv2d_pallas(x, weight, stride=stride, compute_dtype="float32"))
    assert out_f32.shape == ref.shape
    assert jnp.max(jnp.abs(out_f32 - ref)) < 1e-4

    # bfloat16 operand path (v6e/v7x MXU fast path); accumulation stays f32,
    # so only operand-rounding error remains -> loose tolerance.
    out_bf16 = jax.block_until_ready(
        conv2d_pallas(x, weight, stride=stride, compute_dtype="bfloat16"))
    assert out_bf16.shape == ref.shape
    assert jnp.max(jnp.abs(out_bf16 - ref)) < 5e-2

    print("KERNEL_OK")
</pallas_src>

<mosaic_0001>
module attributes {stable_mosaic.version = 11 : i64} {
  func.func @_matmul_kernel(%arg0: i32, %arg1: i32, %arg2: i32, %arg3: memref<256x36xf32, #tpu.memory_space<vmem>>, %arg4: memref<36x8xf32, #tpu.memory_space<vmem>>, %arg5: memref<256x8xf32, #tpu.memory_space<vmem>>, %arg6: memref<256x8xf32, #tpu.memory_space<vmem>>) attributes {dimension_semantics = [#tpu.dimension_semantics<parallel>, #tpu.dimension_semantics<parallel>, #tpu.dimension_semantics<arbitrary>], iteration_bounds = array<i64: 2, 1, 1>, scalar_prefetch = 0 : i64, scratch_operands = 1 : i64, tpu.core_type = #tpu.core_type<tc>, window_params = [{transform_indices = @transform_0, window_bounds = array<i64: 256, 36>}, {transform_indices = @transform_1, window_bounds = array<i64: 36, 8>}, {transform_indices = @transform_2, window_bounds = array<i64: 256, 8>}]} {
    %c0_i32 = arith.constant 0 : i32
    %0 = arith.cmpi eq, %arg2, %c0_i32 : i32
    %1 = arith.extui %0 : i1 to i32
    %c0_i32_0 = arith.constant 0 : i32
    %2 = arith.cmpi ne, %1, %c0_i32_0 : i32
    scf.if %2 {
      %cst_10 = arith.constant 0.000000e+00 : f32
      %12 = vector.broadcast %cst_10 : f32 to vector<256x8xf32>
      %c0_11 = arith.constant 0 : index
      %c0_12 = arith.constant 0 : index
      %13 = vector.load %arg6[%c0_11, %c0_12] : memref<256x8xf32, #tpu.memory_space<vmem>>, vector<256x8xf32>
      tpu.vector_store %arg6[%c0_11, %c0_12], %12 {strides = array<i32>} : memref<256x8xf32, #tpu.memory_space<vmem>>, vector<256x8xf32>,
    } else {
    }
    %c0 = arith.constant 0 : index
    %c0_1 = arith.constant 0 : index
    %3 = vector.load %arg6[%c0, %c0_1] : memref<256x8xf32, #tpu.memory_space<vmem>>, vector<256x8xf32>
    %c0_2 = arith.constant 0 : index
    %c0_3 = arith.constant 0 : index
    %4 = vector.load %arg3[%c0_2, %c0_3] : memref<256x36xf32, #tpu.memory_space<vmem>>, vector<256x36xf32>
    %c0_4 = arith.constant 0 : index
    %c0_5 = arith.constant 0 : index
    %5 = vector.load %arg4[%c0_4, %c0_5] : memref<36x8xf32, #tpu.memory_space<vmem>>, vector<36x8xf32>
    %cst = arith.constant dense<0.000000e+00> : vector<256x8xf32>
    %6 = tpu.matmul %4, %5, %cst {dimension_numbers = #tpu.dot_dimension_numbers<[1], [0], [0], [1], [0, 0, 1, 1], [], []>} : vector<256x36xf32>, vector<36x8xf32>, vector<256x8xf32> -> vector<256x8xf32>
    %7 = arith.addf %3, %6 : vector<256x8xf32>
    %c0_6 = arith.constant 0 : index
    %c0_7 = arith.constant 0 : index
    %8 = vector.load %arg6[%c0_6, %c0_7] : memref<256x8xf32, #tpu.memory_space<vmem>>, vector<256x8xf32>
    tpu.vector_store %arg6[%c0_6, %c0_7], %7 {strides = array<i32>} : memref<256x8xf32, #tpu.memory_space<vmem>>, vector<256x8xf32>,
    %c0_i32_8 = arith.constant 0 : i32
    %9 = arith.cmpi eq, %arg2, %c0_i32_8 : i32
    %10 = arith.extui %9 : i1 to i32
    %c0_i32_9 = arith.constant 0 : i32
    %11 = arith.cmpi ne, %10, %c0_i32_9 : i32
    scf.if %11 {
      %c0_10 = arith.constant 0 : index
      %c0_11 = arith.constant 0 : index
      %12 = vector.load %arg6[%c0_10, %c0_11] : memref<256x8xf32, #tpu.memory_space<vmem>>, vector<256x8xf32>
      %c0_12 = arith.constant 0 : index
      %c0_13 = arith.constant 0 : index
      %13 = vector.load %arg5[%c0_12, %c0_13] : memref<256x8xf32, #tpu.memory_space<vmem>>, vector<256x8xf32>
      tpu.vector_store %arg5[%c0_12, %c0_13], %12 {strides = array<i32>} : memref<256x8xf32, #tpu.memory_space<vmem>>, vector<256x8xf32>,
    } else {
    }
    return
  }
  func.func @transform_0(%arg0: i32, %arg1: i32, %arg2: i32) -> (i32, i32) {
    %c0_i32 = arith.constant 0 : i32
    return %arg0, %arg2 : i32, i32
  }
  func.func @transform_1(%arg0: i32, %arg1: i32, %arg2: i32) -> (i32, i32) {
    %c0_i32 = arith.constant 0 : i32
    return %arg2, %arg1 : i32, i32
  }
  func.func @transform_2(%arg0: i32, %arg1: i32, %arg2: i32) -> (i32, i32) {
    %c0_i32 = arith.constant 0 : i32
    return %arg0, %arg1 : i32, i32
  }
}

</mosaic_0001>

<llo_original>
// kernel: conv2d_pallas.1
$region0: #{conv2d_pallas.1}
  #allocation0 [shape = 'u32[]', space=smem, size = 0x4, offset = 0x4, fixed_abs, tag = 'smem constant byte address 0x4 - core index']
  #allocation1 [shape = 'u32[144,128]{1,0:T(1,128)}', space=vmem, size = 0x12000, scoped, tag = 'internal scratch']
  #allocation2 [shape = 'f32[256,8]{1,0:T(8,128)}', space=vmem, size = 0x20000, scoped, tag = 'scratch operand']
  %s0 = inlined_call_operand.vmem [shape: f32[512,36], index: 0, kind: input, shape index: {}]
  %s1 = inlined_call_operand.vmem [shape: f32[36,8], index: 1, kind: input, shape index: {}]
  %s2 = inlined_call_operand.vmem [shape: f32[512,8], index: 2, kind: output, shape index: {}]
  %s3 = sld [smem:[#allocation0]]
  $region49: #{conv2d_pallas.1} parent=0
    _
  %s5 = ssub.s32 1, %s3
  %s6 = scalar_select 0, %s5, %s3
  loop: start=0, step=1, limit=4
  $region2: #{conv2d_pallas.1} parent=0 // loop_pre_header
    _
  $region3: #{conv2d_pallas.1} parent=0 // loop_header
    %s8 = sphi 0, %s12
    %p9 = scmp.ge.s32.totalorder %s8, 4
    %s15 = sphi 0, %s34
    %s16 = sphi 0, %s30
    %s17 = sphi 0, %s26
    %s18 = sphi 0, %s15
    %s19 = sphi 0, %s16
    %s20 = sphi 0, %s17
    %s21 = sphi 0, %s18
    %s22 = sphi 0, %s19
    %s23 = sphi 0, %s20
    %s39 = sphi 0, %s41
    %s42 = sphi 0, %s39
    %s43 = sphi 0, %s42
    %s59 = sphi 0, %s43
    %s67 = sphi 0, %s69
    %s70 = sphi 0, %s67
    %s71 = sphi 0, %s70
    %s87 = sphi 0, %s71
    %s95 = sphi 0, %s97
    %s98 = sphi 0, %s95
    %s99 = sphi 0, %s98
    %s115 = sphi 0, %s99
  $region4: #{conv2d_pallas.1} parent=0 // loop_header_branch
    %11 = sbr.rel (%p9) target = $region8
  $region5: #{conv2d_pallas.1} parent=0 // loop_body
    %s13 = ssub.s32 %s8, 1
    %s14 = ssub.s32 %s8, 2
    %s24 = sadd.s32 1, %s17
    %p25 = scmp.ge.s32.totalorder %s24, 1
    %s26 = scalar_select %p25, 0, %s24
    %s27 = sadd.s32 1, %s16
    %s28 = scalar_select %p25, %s27, %s16
    %p29 = scmp.ge.s32.totalorder %s28, 1
    %s30 = scalar_select %p29, 0, %s28
    %s31 = sadd.s32 1, %s15
    %s32 = scalar_select %p29, %s31, %s15
    %p33 = scmp.ge.s32.totalorder %s32, 2
    %s34 = scalar_select %p33, 0, %s32
    %s35 = ssub.s32 %s15, %s34
    %s36 = ssub.s32 %s17, %s26
    %s37 = sor.u32 %s35, %s36
    %p38 = scmp.eq.s32.totalorder %s37, 0
    %s40 = sadd.s32 %s39, 1
    %s41 = scalar_select %p38, %s39, %s40
    %p44 = pneg %p38
    %p45 = scmp.eq.s32.totalorder %s8, 1
    %p46 = por %p44, %p45
    %p47 = scmp.ne.s32.totalorder %s39, %s42
    %p48 = scmp.eq.s32.totalorder %s8, 0
    %p49 = por %p47, %p48
    %p50 = scmp.ne.s32.totalorder %s39, %s42
    %p51 = scmp.eq.s32.totalorder %s13, 1
    %p52 = por %p50, %p51
    %p53 = scmp.ne.s32.totalorder %s42, %s43
    %p54 = scmp.eq.s32.totalorder %s13, 0
    %p55 = por %p53, %p54
    %p56 = scmp.ne.s32.totalorder %s42, %s43
    %p57 = scmp.eq.s32.totalorder %s14, 1
    %p58 = por %p56, %p57
    %p60 = scmp.ne.s32.totalorder %s43, %s59
    %p61 = scmp.eq.s32.totalorder %s14, 0
    %p62 = por %p60, %p61
    %s63 = ssub.s32 %s17, %s26
    %s64 = ssub.s32 %s16, %s30
    %s65 = sor.u32 %s63, %s64
    %p66 = scmp.eq.s32.totalorder %s65, 0
    %s68 = sadd.s32 %s67, 1
    %s69 = scalar_select %p66, %s67, %s68
    %p72 = pneg %p66
    %p73 = scmp.eq.s32.totalorder %s8, 1
    %p74 = por %p72, %p73
    %p75 = scmp.ne.s32.totalorder %s67, %s70
    %p76 = scmp.eq.s32.totalorder %s8, 0
    %p77 = por %p75, %p76
    %p78 = scmp.ne.s32.totalorder %s67, %s70
    %p79 = scmp.eq.s32.totalorder %s13, 1
    %p80 = por %p78, %p79
    %p81 = scmp.ne.s32.totalorder %s70, %s71
    %p82 = scmp.eq.s32.totalorder %s13, 0
    %p83 = por %p81, %p82
    %p84 = scmp.ne.s32.totalorder %s70, %s71
    %p85 = scmp.eq.s32.totalorder %s14, 1
    %p86 = por %p84, %p85
    %p88 = scmp.ne.s32.totalorder %s71, %s87
    %p89 = scmp.eq.s32.totalorder %s14, 0
    %p90 = por %p88, %p89
    %s91 = ssub.s32 %s15, %s34
    %s92 = ssub.s32 %s16, %s30
    %s93 = sor.u32 %s91, %s92
    %p94 = scmp.eq.s32.totalorder %s93, 0
    %s96 = sadd.s32 %s95, 1
    %s97 = scalar_select %p94, %s95, %s96
    %p100 = pneg %p94
    %p101 = scmp.eq.s32.totalorder %s8, 1
    %p102 = por %p100, %p101
    %p103 = scmp.ne.s32.totalorder %s95, %s98
    %p104 = scmp.eq.s32.totalorder %s8, 0
    %p105 = por %p103, %p104
    %p106 = scmp.ne.s32.totalorder %s95, %s98
    %p107 = scmp.eq.s32.totalorder %s13, 1
    %p108 = por %p106, %p107
    %p109 = scmp.ne.s32.totalorder %s98, %s99
    %p110 = scmp.eq.s32.totalorder %s13, 0
    %p111 = por %p109, %p110
    %p112 = scmp.ne.s32.totalorder %s98, %s99
    %p113 = scmp.eq.s32.totalorder %s14, 1
    %p114 = por %p112, %p113
    %p116 = scmp.ne.s32.totalorder %s99, %s115
    %p117 = scmp.eq.s32.totalorder %s14, 0
    %p118 = por %p116, %p117
    %p119 = scmp.le.s32.totalorder 1, %s8
    %p120 = scmp.lt.s32.totalorder %s8, 3
    %p121 = pnand %p119, %p120
    %p122 = pneg %p121
    // Predicated region
    $region9: #{conv2d_pallas.1} parent=5 // pred_check
      _
    $region10: #{conv2d_pallas.1} parent=5 // pred_check_branch
      %124 = sbr.rel (%p121) target = $region12
    $region11: #{conv2d_pallas.1} parent=5 // pred_region
      %s125 = ssub.s32 %s8, 1
      // Predicated region
      $region13: #{conv2d_pallas.1} parent=11 // pred_check
        %p126 = pneg %p83
      $region14: #{conv2d_pallas.1} parent=11 // pred_check_branch
        %128 = sbr.rel (%p126) target = $region16
      $region15: #{conv2d_pallas.1} parent=11 // pred_region
        %s129 = smul.u32 5, %s20
        %p130 = scmp.lt.s32.totalorder %s129, 4
        %s131 = scalar_select %p130, %s129, 4
        %p132 = scmp.lt.s32.totalorder %s19, 0
        %s133 = scalar_select %p132, %s19, 0
        %s134 = sadd.s32 %s133, %s131
        %s135 = smul.addr %s134, 8
        %s136 = scalar_lea.vmem %s1, %s135
        %s137 = smul.u32 5, %s20
      $region16: #{conv2d_pallas.1} parent=11 // pred_fallthru
        _
    $region12: #{conv2d_pallas.1} parent=5 // pred_fallthru
      _
    %p138 = scmp.lt.s32.totalorder %s8, 2
    // Predicated region
    $region17: #{conv2d_pallas.1} parent=5 // pred_check
      %p139 = pneg %p138
    $region18: #{conv2d_pallas.1} parent=5 // pred_check_branch
      %141 = sbr.rel (%p139) target = $region20
    $region19: #{conv2d_pallas.1} parent=5 // pred_region
      // Predicated region
      $region21: #{conv2d_pallas.1} parent=19 // pred_check
        %p142 = pneg %p49
      $region22: #{conv2d_pallas.1} parent=19 // pred_check_branch
        %144 = sbr.rel (%p142) target = $region24
      $region23: #{conv2d_pallas.1} parent=19 // pred_region
        %s145 = smul.u32 32, %s15
        %p146 = scmp.lt.s32.totalorder %s145, 63
        %s147 = scalar_select %p146, %s145, 63
        %p148 = scmp.lt.s32.totalorder %s17, 0
        %s149 = scalar_select %p148, %s17, 0
        %s150 = sadd.s32 %s149, %s147
        %s151 = smul.addr %s150, 8
        %s152 = scalar_lea.vmem %s0, %s151
        %s153 = smul.u32 32, %s15
      $region24: #{conv2d_pallas.1} parent=19 // pred_fallthru
        _
    $region20: #{conv2d_pallas.1} parent=5 // pred_fallthru
      _
    %p154 = scmp.le.s32.totalorder 1, %s8
    %p155 = scmp.lt.s32.totalorder %s8, 3
    %p156 = pnand %p154, %p155
    %p157 = pneg %p156
    // Predicated region
    $region25: #{conv2d_pallas.1} parent=5 // pred_check
      _
    $region26: #{conv2d_pallas.1} parent=5 // pred_check_branch
      %159 = sbr.rel (%p156) target = $region28
    $region27: #{conv2d_pallas.1} parent=5 // pred_region
      %s160 = ssub.s32 %s8, 1
      %s161 = smul.u32 32, %s18
      %p162 = scmp.lt.s32.totalorder %s161, 63
      %s163 = scalar_select %p162, %s161, 63
      %p164 = scmp.lt.s32.totalorder %s20, 0
      %s165 = scalar_select %p164, %s20, 0
      %s166 = sadd.s32 %s165, %s163
      %s167 = smul.addr %s166, 8
      %s168 = scalar_lea.vmem %s0, %s167
      %p169 = pneg %p55
      %p170 = pneg %p52
      %s171 = smul.u32 5, %s20
      %p172 = scmp.lt.s32.totalorder %s171, 4
      %s173 = scalar_select %p172, %s171, 4
      %p174 = scmp.lt.s32.totalorder %s19, 0
      %s175 = scalar_select %p174, %s19, 0
      %s176 = sadd.s32 %s175, %s173
      %s177 = smul.addr %s176, 8
      %s178 = scalar_lea.vmem %s1, %s177
      %p179 = pneg %p83
      %p180 = pneg %p80
      %p181 = pneg %p111
      %p182 = pneg %p108
      %s183 = smul.u32 32, %s18
      %p184 = scmp.lt.s32.totalorder %s183, 63
      %s185 = scalar_select %p184, %s183, 63
      %p186 = scmp.lt.s32.totalorder %s19, 0
      %s187 = scalar_select %p186, %s19, 0
      %s188 = sadd.s32 %s187, %s185
      %s189 = smul.addr %s188, 8
      %s190 = scalar_lea.vmem %s2, %s189
      %s191 = smul.u32 32, %s18
      %p192 = scmp.lt.s32.totalorder %s191, 63
      %s193 = scalar_select %p192, %s191, 63
      %p194 = scmp.lt.s32.totalorder %s20, 0
      %s195 = scalar_select %p194, %s20, 0
      %s196 = sadd.s32 %s195, %s193
      %s197 = smul.addr %s196, 8
      %s198 = scalar_lea.vmem %s0, %s197
      %s199 = smul.u32 32, %s18
      %s200 = smul.u32 5, %s20
      %p201 = scmp.lt.s32.totalorder %s200, 4
      %s202 = scalar_select %p201, %s200, 4
      %p203 = scmp.lt.s32.totalorder %s19, 0
      %s204 = scalar_select %p203, %s19, 0
      %s205 = sadd.s32 %s204, %s202
      %s206 = smul.addr %s205, 8
      %s207 = scalar_lea.vmem %s1, %s206
      %s208 = smul.u32 5, %s20
      %s209 = smul.u32 32, %s18
      %p210 = scmp.lt.s32.totalorder %s209, 63
      %s211 = scalar_select %p210, %s209, 63
      %p212 = scmp.lt.s32.totalorder %s19, 0
      %s213 = scalar_select %p212, %s19, 0
      %s214 = sadd.s32 %s213, %s211
      %s215 = smul.addr %s214, 8
      %s216 = scalar_lea.vmem %s2, %s215
      %s217 = smul.u32 32, %s18
      %p218 = scmp.eq.s32.totalorder %s20, 0
      // Predicated region
      $region29: #{conv2d_pallas.1} parent=27 // pred_check
        %p219 = pneg %p218
      $region30: #{conv2d_pallas.1} parent=27 // pred_check_branch
        %221 = sbr.rel (%p219) target = $region32
      $region31: #{conv2d_pallas.1} parent=27 // pred_region
        %vm222 = vcmask 64512
        %223 = vst.msk [vmem:[#allocation2] sm:$0xff] %vm222, 0.0
        %224 = vst.msk [vmem:[#allocation2 + $0x8] sm:$0xff] %vm222, 0.0
        %225 = vst.msk [vmem:[#allocation2 + $0x10] sm:$0xff] %vm222, 0.0
        %226 = vst.msk [vmem:[#allocation2 + $0x18] sm:$0xff] %vm222, 0.0
        %227 = vst.msk [vmem:[#allocation2 + $0x20] sm:$0xff] %vm222, 0.0
        %228 = vst.msk [vmem:[#allocation2 + $0x28] sm:$0xff] %vm222, 0.0
        %229 = vst.msk [vmem:[#allocation2 + $0x30] sm:$0xff] %vm222, 0.0
        %230 = vst.msk [vmem:[#allocation2 + $0x38] sm:$0xff] %vm222, 0.0
        %231 = vst.msk [vmem:[#allocation2 + $0x40] sm:$0xff] %vm222, 0.0
        %232 = vst.msk [vmem:[#allocation2 + $0x48] sm:$0xff] %vm222, 0.0
        %233 = vst.msk [vmem:[#allocation2 + $0x50] sm:$0xff] %vm222, 0.0
        %234 = vst.msk [vmem:[#allocation2 + $0x58] sm:$0xff] %vm222, 0.0
        %235 = vst.msk [vmem:[#allocation2 + $0x60] sm:$0xff] %vm222, 0.0
        %236 = vst.msk [vmem:[#allocation2 + $0x68] sm:$0xff] %vm222, 0.0
        %237 = vst.msk [vmem:[#allocation2 + $0x70] sm:$0xff] %vm222, 0.0
        %238 = vst.msk [vmem:[#allocation2 + $0x78] sm:$0xff] %vm222, 0.0
        %239 = vst.msk [vmem:[#allocation2 + $0x80] sm:$0xff] %vm222, 0.0
        %240 = vst.msk [vmem:[#allocation2 + $0x88] sm:$0xff] %vm222, 0.0
        %241 = vst.msk [vmem:[#allocation2 + $0x90] sm:$0xff] %vm222, 0.0
        %242 = vst.msk [vmem:[#allocation2 + $0x98] sm:$0xff] %vm222, 0.0
        %243 = vst.msk [vmem:[#allocation2 + $0xa0] sm:$0xff] %vm222, 0.0
        %244 = vst.msk [vmem:[#allocation2 + $0xa8] sm:$0xff] %vm222, 0.0
        %245 = vst.msk [vmem:[#allocation2 + $0xb0] sm:$0xff] %vm222, 0.0
        %246 = vst.msk [vmem:[#allocation2 + $0xb8] sm:$0xff] %vm222, 0.0
        %247 = vst.msk [vmem:[#allocation2 + $0xc0] sm:$0xff] %vm222, 0.0
        %248 = vst.msk [vmem:[#allocation2 + $0xc8] sm:$0xff] %vm222, 0.0
        %249 = vst.msk [vmem:[#allocation2 + $0xd0] sm:$0xff] %vm222, 0.0
        %250 = vst.msk [vmem:[#allocation2 + $0xd8] sm:$0xff] %vm222, 0.0
        %251 = vst.msk [vmem:[#allocation2 + $0xe0] sm:$0xff] %vm222, 0.0
        %252 = vst.msk [vmem:[#allocation2 + $0xe8] sm:$0xff] %vm222, 0.0
        %253 = vst.msk [vmem:[#allocation2 + $0xf0] sm:$0xff] %vm222, 0.0
        %254 = vst.msk [vmem:[#allocation2 + $0xf8] sm:$0xff] %vm222, 0.0
      $region32: #{conv2d_pallas.1} parent=27 // pred_fallthru
        _
      %v255 = vld [vmem:[#allocation2] sm:$0xff]
      %v256 = vld [vmem:[#allocation2 + $0x8] sm:$0xff]
      %v257 = vld [vmem:[#allocation2 + $0x10] sm:$0xff]
      %v258 = vld [vmem:[#allocation2 + $0x18] sm:$0xff]
      %v259 = vld [vmem:[#allocation2 + $0x20] sm:$0xff]
      %v260 = vld [vmem:[#allocation2 + $0x28] sm:$0xff]
      %v261 = vld [vmem:[#allocation2 + $0x30] sm:$0xff]
      %v262 = vld [vmem:[#allocation2 + $0x38] sm:$0xff]
      %v263 = vld [vmem:[#allocation2 + $0x40] sm:$0xff]
      %v264 = vld [vmem:[#allocation2 + $0x48] sm:$0xff]
      %v265 = vld [vmem:[#allocation2 + $0x50] sm:$0xff]
      %v266 = vld [vmem:[#allocation2 + $0x58] sm:$0xff]
      %v267 = vld [vmem:[#allocation2 + $0x60] sm:$0xff]
      %v268 = vld [vmem:[#allocation2 + $0x68] sm:$0xff]
      %v269 = vld [vmem:[#allocation2 + $0x70] sm:$0xff]
      %v270 = vld [vmem:[#allocation2 + $0x78] sm:$0xff]
      %v271 = vld [vmem:[#allocation2 + $0x80] sm:$0xff]
      %v272 = vld [vmem:[#allocation2 + $0x88] sm:$0xff]
      %v273 = vld [vmem:[#allocation2 + $0x90] sm:$0xff]
      %v274 = vld [vmem:[#allocation2 + $0x98] sm:$0xff]
      %v275 = vld [vmem:[#allocation2 + $0xa0] sm:$0xff]
      %v276 = vld [vmem:[#allocation2 + $0xa8] sm:$0xff]
      %v277 = vld [vmem:[#allocation2 + $0xb0] sm:$0xff]
      %v278 = vld [vmem:[#allocation2 + $0xb8] sm:$0xff]
      %v279 = vld [vmem:[#allocation2 + $0xc0] sm:$0xff]
      %v280 = vld [vmem:[#allocation2 + $0xc8] sm:$0xff]
      %v281 = vld [vmem:[#allocation2 + $0xd0] sm:$0xff]
      %v282 = vld [vmem:[#allocation2 + $0xd8] sm:$0xff]
      %v283 = vld [vmem:[#allocation2 + $0xe0] sm:$0xff]
      %v284 = vld [vmem:[#allocation2 + $0xe8] sm:$0xff]
      %v285 = vld [vmem:[#allocation2 + $0xf0] sm:$0xff]
      %v286 = vld [vmem:[#allocation2 + $0xf8] sm:$0xff]
      %v287 = vld [vmem:[%s198] sm:$0xff]
      %v288 = vld [vmem:[%s198 + $0x8] sm:$0xff]
      %v289 = vld [vmem:[%s198 + $0x10] sm:$0xff]
      %v290 = vld [vmem:[%s198 + $0x18] sm:$0xff]
      %v291 = vld [vmem:[%s198 + $0x20] sm:$0xff]
      %v292 = vld [vmem:[%s198 + $0x28] sm:$0xff]
      %v293 = vld [vmem:[%s198 + $0x30] sm:$0xff]
      %v294 = vld [vmem:[%s198 + $0x38] sm:$0xff]
      %v295 = vld [vmem:[%s198 + $0x40] sm:$0xff]
      %v296 = vld [vmem:[%s198 + $0x48] sm:$0xff]
      %v297 = vld [vmem:[%s198 + $0x50] sm:$0xff]
      %v298 = vld [vmem:[%s198 + $0x58] sm:$0xff]
      %v299 = vld [vmem:[%s198 + $0x60] sm:$0xff]
      %v300 = vld [vmem:[%s198 + $0x68] sm:$0xff]
      %v301 = vld [vmem:[%s198 + $0x70] sm:$0xff]
      %v302 = vld [vmem:[%s198 + $0x78] sm:$0xff]
      %v303 = vld [vmem:[%s198 + $0x80] sm:$0xff]
      %v304 = vld [vmem:[%s198 + $0x88] sm:$0xff]
      %v305 = vld [vmem:[%s198 + $0x90] sm:$0xff]
      %v306 = vld [vmem:[%s198 + $0x98] sm:$0xff]
      %v307 = vld [vmem:[%s198 + $0xa0] sm:$0xff]
      %v308 = vld [vmem:[%s198 + $0xa8] sm:$0xff]
      %v309 = vld [vmem:[%s198 + $0xb0] sm:$0xff]
      %v310 = vld [vmem:[%s198 + $0xb8] sm:$0xff]
      %v311 = vld [vmem:[%s198 + $0xc0] sm:$0xff]
      %v312 = vld [vmem:[%s198 + $0xc8] sm:$0xff]
      %v313 = vld [vmem:[%s198 + $0xd0] sm:$0xff]
      %v314 = vld [vmem:[%s198 + $0xd8] sm:$0xff]
      %v315 = vld [vmem:[%s198 + $0xe0] sm:$0xff]
      %v316 = vld [vmem:[%s198 + $0xe8] sm:$0xff]
      %v317 = vld [vmem:[%s198 + $0xf0] sm:$0xff]
      %v318 = vld [vmem:[%s198 + $0xf8] sm:$0xff]
      %v319 = vld [vmem:[%s207] sm:$0xff]
      %v320 = vld [vmem:[%s207 + $0x8] sm:$0xff]
      %v321 = vld [vmem:[%s207 + $0x10] sm:$0xff]
      %v322 = vld [vmem:[%s207 + $0x18] sm:$0xff]
      %v323 = vld [vmem:[%s207 + $0x20] sm:$0xf]
      %vm324 = vcmask 293888
      %v326 = vsel %vm324, %v287, 0
      %v329 = vsel %vm324, %v288, 0
      %v332 = vsel %vm324, %v289, 0
      %v335 = vsel %vm324, %v290, 0
      %v338 = vsel %vm324, %v291, 0
      %v341 = vsel %vm324, %v292, 0
      %v344 = vsel %vm324, %v293, 0
      %v347 = vsel %vm324, %v294, 0
      %v350 = vsel %vm324, %v295, 0
      %v353 = vsel %vm324, %v296, 0
      %v356 = vsel %vm324, %v297, 0
      %v359 = vsel %vm324, %v298, 0
      %v362 = vsel %vm324, %v299, 0
      %v365 = vsel %vm324, %v300, 0
      %v368 = vsel %vm324, %v301, 0
      %v371 = vsel %vm324, %v302, 0
      %v374 = vsel %vm324, %v303, 0
      %v377 = vsel %vm324, %v304, 0
      %v380 = vsel %vm324, %v305, 0
      %v383 = vsel %vm324, %v306, 0
      %v386 = vsel %vm324, %v307, 0
      %v389 = vsel %vm324, %v308, 0
      %v392 = vsel %vm324, %v309, 0
      %v395 = vsel %vm324, %v310, 0
      %v398 = vsel %vm324, %v311, 0
      %v401 = vsel %vm324, %v312, 0
      %v404 = vsel %vm324, %v313, 0
      %v407 = vsel %vm324, %v314, 0
      %v410 = vsel %vm324, %v315, 0
      %v413 = vsel %vm324, %v316, 0
      %v416 = vsel %vm324, %v317, 0
      %v419 = vsel %vm324, %v318, 0
      %vm421 = vcmask 1043456
      %v423 = vsel %vm421, %v323, 0
      %425 = vmatprep.subr.mxu0 0.0
      %426 = vmatpush1.msra.mxu0 0.0
      %427 = vmatprep.subr.mxu0 0.0
      %428 = vmatpush1.msra.mxu0 0.0
      %429 = vmatprep.subr.mxu0 0.0
      %430 = vmatpush1.msra.mxu0 0.0
      %431 = vmatprep.subr.mxu0 0.0
      %432 = vmatpush1.msra.mxu0 0.0
      %433 = vmatprep.subr.mxu0 0.0
      %434 = vmatpush1.msra.mxu0 0.0
      %435 = vmatprep.subr.mxu0 0.0
      %436 = vmatpush1.msra.mxu0 0.0
      %437 = vmatprep.subr.mxu0 0.0
      %438 = vmatpush1.msra.mxu0 0.0
      %439 = vmatprep.subr.mxu0 0.0
      %440 = vmatpush1.msra.mxu0 0.0
      %441 = vmatprep.subr.mxu0 0.0
      %442 = vmatpush1.msra.mxu0 0.0
      %443 = vmatprep.subr.mxu0 0.0
      %444 = vmatpush1.msra.mxu0 0.0
      %445 = vmatprep.subr.mxu0 0.0
      %446 = vmatpush1.msra.mxu0 0.0
      %447 = vmatprep.subr.mxu0 0.0
      %448 = vmatpush1.msra.mxu0 %v423
      %449 = vmatprep.subr.mxu0 0.0
      %450 = vmatpush1.msra.mxu0 %v322
      %451 = vmatprep.subr.mxu0 0.0
      %452 = vmatpush1.msra.mxu0 %v321
      %453 = vmatprep.subr.mxu0 0.0
      %454 = vmatpush1.msra.mxu0 %v320
      %455 = vmatprep.subr.mxu0 0.0
      %456 = vmatpush1.msra.mxu0 %v319
      %457 = vmatprep.subr.mxu0 0.0
      %458 = vmatpush2.msra.mxu0 0.0
      %459 = vmatprep.subr.mxu0 0.0
      %460 = vmatpush2.msra.mxu0 0.0
      %461 = vmatprep.subr.mxu0 0.0
      %462 = vmatpush2.msra.mxu0 0.0
      %463 = vmatprep.subr.mxu0 0.0
      %464 = vmatpush2.msra.mxu0 0.0
      %465 = vmatprep.subr.mxu0 0.0
      %466 = vmatpush2.msra.mxu0 0.0
      %467 = vmatprep.subr.mxu0 0.0
      %468 = vmatpush2.msra.mxu0 0.0
      %469 = vmatprep.subr.mxu0 0.0
      %470 = vmatpush2.msra.mxu0 0.0
      %471 = vmatprep.subr.mxu0 0.0
      %472 = vmatpush2.msra.mxu0 0.0
      %473 = vmatprep.subr.mxu0 0.0
      %474 = vmatpush2.msra.mxu0 0.0
      %475 = vmatprep.subr.mxu0 0.0
      %476 = vmatpush2.msra.mxu0 0.0
      %477 = vmatprep.subr.mxu0 0.0
      %478 = vmatpush2.msra.mxu0 0.0
      %479 = vmatprep.subr.mxu0 0.0
      %480 = vmatpush2.msra.mxu0 0.0
      %481 = vmatprep.subr.mxu0 0.0
      %482 = vmatpush2.msra.mxu0 0.0
      %483 = vmatprep.subr.mxu0 0.0
      %484 = vmatpush2.msra.mxu0 0.0
      %485 = vmatprep.subr.mxu0 0.0
      %486 = vmatpush2.msra.mxu0 0.0
      %487 = vmatprep.subr.mxu0 0.0
      %488 = vmatpush2.msra.mxu0 0.0
      %489 = vmatprep.mubr.f32.mxu0 0.0
      %490 = vmatmul.mubr.f32.gmra.mxu0 %v326
      %v491 = vpop.f32.mrf.mxu0
      %v492 = vadd.f32 0.0, %v491
      %v493 = vpop.f32.mrf.mxu0
      %494 = vmatprep.mubr.f32.mxu0 0.0
      %495 = vmatmul.mubr.f32.gmra.mxu0 %v329
      %v496 = vpop.f32.mrf.mxu0
      %v497 = vadd.f32 0.0, %v496
      %v498 = vpop.f32.mrf.mxu0
      %499 = vmatprep.mubr.f32.mxu0 0.0
      %500 = vmatmul.mubr.f32.gmra.mxu0 %v332
      %v501 = vpop.f32.mrf.mxu0
      %v502 = vadd.f32 0.0, %v501
      %v503 = vpop.f32.mrf.mxu0
      %504 = vmatprep.mubr.f32.mxu0 0.0
      %505 = vmatmul.mubr.f32.gmra.mxu0 %v335
      %v506 = vpop.f32.mrf.mxu0
      %v507 = vadd.f32 0.0, %v506
      %v508 = vpop.f32.mrf.mxu0
      %509 = vmatprep.mubr.f32.mxu0 0.0
      %510 = vmatmul.mubr.f32.gmra.mxu0 %v338
      %v511 = vpop.f32.mrf.mxu0
      %v512 = vadd.f32 0.0, %v511
      %v513 = vpop.f32.mrf.mxu0
      %514 = vmatprep.mubr.f32.mxu0 0.0
      %515 = vmatmul.mubr.f32.gmra.mxu0 %v341
      %v516 = vpop.f32.mrf.mxu0
      %v517 = vadd.f32 0.0, %v516
      %v518 = vpop.f32.mrf.mxu0
      %519 = vmatprep.mubr.f32.mxu0 0.0
      %520 = vmatmul.mubr.f32.gmra.mxu0 %v344
      %v521 = vpop.f32.mrf.mxu0
      %v522 = vadd.f32 0.0, %v521
      %v523 = vpop.f32.mrf.mxu0
      %524 = vmatprep.mubr.f32.mxu0 0.0
      %525 = vmatmul.mubr.f32.gmra.mxu0 %v347
      %v526 = vpop.f32.mrf.mxu0
      %v527 = vadd.f32 0.0, %v526
      %v528 = vpop.f32.mrf.mxu0
      %529 = vmatprep.mubr.f32.mxu0 0.0
      %530 = vmatmul.mubr.f32.gmra.mxu0 %v350
      %v531 = vpop.f32.mrf.mxu0
      %v532 = vadd.f32 0.0, %v531
      %v533 = vpop.f32.mrf.mxu0
      %534 = vmatprep.mubr.f32.mxu0 0.0
      %535 = vmatmul.mubr.f32.gmra.mxu0 %v353
      %v536 = vpop.f32.mrf.mxu0
      %v537 = vadd.f32 0.0, %v536
      %v538 = vpop.f32.mrf.mxu0
      %539 = vmatprep.mubr.f32.mxu0 0.0
      %540 = vmatmul.mubr.f32.gmra.mxu0 %v356
      %v541 = vpop.f32.mrf.mxu0
      %v542 = vadd.f32 0.0, %v541
      %v543 = vpop.f32.mrf.mxu0
      %544 = vmatprep.mubr.f32.mxu0 0.0
      %545 = vmatmul.mubr.f32.gmra.mxu0 %v359
      %v546 = vpop.f32.mrf.mxu0
      %v547 = vadd.f32 0.0, %v546
      %v548 = vpop.f32.mrf.mxu0
      %549 = vmatprep.mubr.f32.mxu0 0.0
      %550 = vmatmul.mubr.f32.gmra.mxu0 %v362
      %v551 = vpop.f32.mrf.mxu0
      %v552 = vadd.f32 0.0, %v551
      %v553 = vpop.f32.mrf.mxu0
      %554 = vmatprep.mubr.f32.mxu0 0.0
      %555 = vmatmul.mubr.f32.gmra.mxu0 %v365
      %v556 = vpop.f32.mrf.mxu0
      %v557 = vadd.f32 0.0, %v556
      %v558 = vpop.f32.mrf.mxu0
      %559 = vmatprep.mubr.f32.mxu0 0.0
      %560 = vmatmul.mubr.f32.gmra.mxu0 %v368
      %v561 = vpop.f32.mrf.mxu0
      %v562 = vadd.f32 0.0, %v561
      %v563 = vpop.f32.mrf.mxu0
      %564 = vmatprep.mubr.f32.mxu0 0.0
      %565 = vmatmul.mubr.f32.gmra.mxu0 %v371
      %v566 = vpop.f32.mrf.mxu0
      %v567 = vadd.f32 0.0, %v566
      %v568 = vpop.f32.mrf.mxu0
      %569 = vmatprep.mubr.f32.mxu0 0.0
      %570 = vmatmul.mubr.f32.gmra.mxu0 %v374
      %v571 = vpop.f32.mrf.mxu0
      %v572 = vadd.f32 0.0, %v571
      %v573 = vpop.f32.mrf.mxu0
      %574 = vmatprep.mubr.f32.mxu0 0.0
      %575 = vmatmul.mubr.f32.gmra.mxu0 %v377
      %v576 = vpop.f32.mrf.mxu0
      %v577 = vadd.f32 0.0, %v576
      %v578 = vpop.f32.mrf.mxu0
      %579 = vmatprep.mubr.f32.mxu0 0.0
      %580 = vmatmul.mubr.f32.gmra.mxu0 %v380
      %v581 = vpop.f32.mrf.mxu0
      %v582 = vadd.f32 0.0, %v581
      %v583 = vpop.f32.mrf.mxu0
      %584 = vmatprep.mubr.f32.mxu0 0.0
      %585 = vmatmul.mubr.f32.gmra.mxu0 %v383
      %v586 = vpop.f32.mrf.mxu0
      %v587 = vadd.f32 0.0, %v586
      %v588 = vpop.f32.mrf.mxu0
      %589 = vmatprep.mubr.f32.mxu0 0.0
      %590 = vmatmul.mubr.f32.gmra.mxu0 %v386
      %v591 = vpop.f32.mrf.mxu0
      %v592 = vadd.f32 0.0, %v591
      %v593 = vpop.f32.mrf.mxu0
      %594 = vmatprep.mubr.f32.mxu0 0.0
      %595 = vmatmul.mubr.f32.gmra.mxu0 %v389
      %v596 = vpop.f32.mrf.mxu0
      %v597 = vadd.f32 0.0, %v596
      %v598 = vpop.f32.mrf.mxu0
      %599 = vmatprep.mubr.f32.mxu0 0.0
      %600 = vmatmul.mubr.f32.gmra.mxu0 %v392
      %v601 = vpop.f32.mrf.mxu0
      %v602 = vadd.f32 0.0, %v601
      %v603 = vpop.f32.mrf.mxu0
      %604 = vmatprep.mubr.f32.mxu0 0.0
      %605 = vmatmul.mubr.f32.gmra.mxu0 %v395
      %v606 = vpop.f32.mrf.mxu0
      %v607 = vadd.f32 0.0, %v606
      %v608 = vpop.f32.mrf.mxu0
      %609 = vmatprep.mubr.f32.mxu0 0.0
      %610 = vmatmul.mubr.f32.gmra.mxu0 %v398
      %v611 = vpop.f32.mrf.mxu0
      %v612 = vadd.f32 0.0, %v611
      %v613 = vpop.f32.mrf.mxu0
      %614 = vmatprep.mubr.f32.mxu0 0.0
      %615 = vmatmul.mubr.f32.gmra.mxu0 %v401
      %v616 = vpop.f32.mrf.mxu0
      %v617 = vadd.f32 0.0, %v616
      %v618 = vpop.f32.mrf.mxu0
      %619 = vmatprep.mubr.f32.mxu0 0.0
      %620 = vmatmul.mubr.f32.gmra.mxu0 %v404
      %v621 = vpop.f32.mrf.mxu0
      %v622 = vadd.f32 0.0, %v621
      %v623 = vpop.f32.mrf.mxu0
      %624 = vmatprep.mubr.f32.mxu0 0.0
      %625 = vmatmul.mubr.f32.gmra.mxu0 %v407
      %v626 = vpop.f32.mrf.mxu0
      %v627 = vadd.f32 0.0, %v626
      %v628 = vpop.f32.mrf.mxu0
      %629 = vmatprep.mubr.f32.mxu0 0.0
      %630 = vmatmul.mubr.f32.gmra.mxu0 %v410
      %v631 = vpop.f32.mrf.mxu0
      %v632 = vadd.f32 0.0, %v631
      %v633 = vpop.f32.mrf.mxu0
      %634 = vmatprep.mubr.f32.mxu0 0.0
      %635 = vmatmul.mubr.f32.gmra.mxu0 %v413
      %v636 = vpop.f32.mrf.mxu0
      %v637 = vadd.f32 0.0, %v636
      %v638 = vpop.f32.mrf.mxu0
      %639 = vmatprep.mubr.f32.mxu0 0.0
      %640 = vmatmul.mubr.f32.gmra.mxu0 %v416
      %v641 = vpop.f32.mrf.mxu0
      %v642 = vadd.f32 0.0, %v641
      %v643 = vpop.f32.mrf.mxu0
      %644 = vmatprep.mubr.f32.mxu0 0.0
      %645 = vmatmul.mubr.f32.gmra.mxu0 %v419
      %v646 = vpop.f32.mrf.mxu0
      %v647 = vadd.f32 0.0, %v646
      %v648 = vpop.f32.mrf.mxu0
      %649 = vdwg.mxu0
      %v650 = vadd.f32 %v255, %v492
      %v651 = vadd.f32 %v256, %v497
      %v652 = vadd.f32 %v257, %v502
      %v653 = vadd.f32 %v258, %v507
      %v654 = vadd.f32 %v259, %v512
      %v655 = vadd.f32 %v260, %v517
      %v656 = vadd.f32 %v261, %v522
      %v657 = vadd.f32 %v262, %v527
      %v658 = vadd.f32 %v263, %v532
      %v659 = vadd.f32 %v264, %v537
      %v660 = vadd.f32 %v265, %v542
      %v661 = vadd.f32 %v266, %v547
      %v662 = vadd.f32 %v267, %v552
      %v663 = vadd.f32 %v268, %v557
      %v664 = vadd.f32 %v269, %v562
      %v665 = vadd.f32 %v270, %v567
      %v666 = vadd.f32 %v271, %v572
      %v667 = vadd.f32 %v272, %v577
      %v668 = vadd.f32 %v273, %v582
      %v669 = vadd.f32 %v274, %v587
      %v670 = vadd.f32 %v275, %v592
      %v671 = vadd.f32 %v276, %v597
      %v672 = vadd.f32 %v277, %v602
      %v673 = vadd.f32 %v278, %v607
      %v674 = vadd.f32 %v279, %v612
      %v675 = vadd.f32 %v280, %v617
      %v676 = vadd.f32 %v281, %v622
      %v677 = vadd.f32 %v282, %v627
      %v678 = vadd.f32 %v283, %v632
      %v679 = vadd.f32 %v284, %v637
      %v680 = vadd.f32 %v285, %v642
      %v681 = vadd.f32 %v286, %v647
      %vm682 = vcmask 64512
      %683 = vst.msk [vmem:[#allocation2] sm:$0xff] %vm682, %v650
      %684 = vst.msk [vmem:[#allocation2 + $0x8] sm:$0xff] %vm682, %v651
      %685 = vst.msk [vmem:[#allocation2 + $0x10] sm:$0xff] %vm682, %v652
      %686 = vst.msk [vmem:[#allocation2 + $0x18] sm:$0xff] %vm682, %v653
      %687 = vst.msk [vmem:[#allocation2 + $0x20] sm:$0xff] %vm682, %v654
      %688 = vst.msk [vmem:[#allocation2 + $0x28] sm:$0xff] %vm682, %v655
      %689 = vst.msk [vmem:[#allocation2 + $0x30] sm:$0xff] %vm682, %v656
      %690 = vst.msk [vmem:[#allocation2 + $0x38] sm:$0xff] %vm682, %v657
      %691 = vst.msk [vmem:[#allocation2 + $0x40] sm:$0xff] %vm682, %v658
      %692 = vst.msk [vmem:[#allocation2 + $0x48] sm:$0xff] %vm682, %v659
      %693 = vst.msk [vmem:[#allocation2 + $0x50] sm:$0xff] %vm682, %v660
      %694 = vst.msk [vmem:[#allocation2 + $0x58] sm:$0xff] %vm682, %v661
      %695 = vst.msk [vmem:[#allocation2 + $0x60] sm:$0xff] %vm682, %v662
      %696 = vst.msk [vmem:[#allocation2 + $0x68] sm:$0xff] %vm682, %v663
      %697 = vst.msk [vmem:[#allocation2 + $0x70] sm:$0xff] %vm682, %v664
      %698 = vst.msk [vmem:[#allocation2 + $0x78] sm:$0xff] %vm682, %v665
      %699 = vst.msk [vmem:[#allocation2 + $0x80] sm:$0xff] %vm682, %v666
      %700 = vst.msk [vmem:[#allocation2 + $0x88] sm:$0xff] %vm682, %v667
      %701 = vst.msk [vmem:[#allocation2 + $0x90] sm:$0xff] %vm682, %v668
      %702 = vst.msk [vmem:[#allocation2 + $0x98] sm:$0xff] %vm682, %v669
      %703 = vst.msk [vmem:[#allocation2 + $0xa0] sm:$0xff] %vm682, %v670
      %704 = vst.msk [vmem:[#allocation2 + $0xa8] sm:$0xff] %vm682, %v671
      %705 = vst.msk [vmem:[#allocation2 + $0xb0] sm:$0xff] %vm682, %v672
      %706 = vst.msk [vmem:[#allocation2 + $0xb8] sm:$0xff] %vm682, %v673
      %707 = vst.msk [vmem:[#allocation2 + $0xc0] sm:$0xff] %vm682, %v674
      %708 = vst.msk [vmem:[#allocation2 + $0xc8] sm:$0xff] %vm682, %v675
      %709 = vst.msk [vmem:[#allocation2 + $0xd0] sm:$0xff] %vm682, %v676
      %710 = vst.msk [vmem:[#allocation2 + $0xd8] sm:$0xff] %vm682, %v677
      %711 = vst.msk [vmem:[#allocation2 + $0xe0] sm:$0xff] %vm682, %v678
      %712 = vst.msk [vmem:[#allocation2 + $0xe8] sm:$0xff] %vm682, %v679
      %713 = vst.msk [vmem:[#allocation2 + $0xf0] sm:$0xff] %vm682, %v680
      %714 = vst.msk [vmem:[#allocation2 + $0xf8] sm:$0xff] %vm682, %v681
      // Predicated region
      $region33: #{conv2d_pallas.1} parent=27 // pred_check
        %p715 = pneg %p218
      $region34: #{conv2d_pallas.1} parent=27 // pred_check_branch
        %717 = sbr.rel (%p715) target = $region36
      $region35: #{conv2d_pallas.1} parent=27 // pred_region
        %v718 = vld [vmem:[#allocation2] sm:$0xff]
        %v719 = vld [vmem:[#allocation2 + $0x8] sm:$0xff]
        %v720 = vld [vmem:[#allocation2 + $0x10] sm:$0xff]
        %v721 = vld [vmem:[#allocation2 + $0x18] sm:$0xff]
        %v722 = vld [vmem:[#allocation2 + $0x20] sm:$0xff]
        %v723 = vld [vmem:[#allocation2 + $0x28] sm:$0xff]
        %v724 = vld [vmem:[#allocation2 + $0x30] sm:$0xff]
        %v725 = vld [vmem:[#allocation2 + $0x38] sm:$0xff]
        %v726 = vld [vmem:[#allocation2 + $0x40] sm:$0xff]
        %v727 = vld [vmem:[#allocation2 + $0x48] sm:$0xff]
        %v728 = vld [vmem:[#allocation2 + $0x50] sm:$0xff]
        %v729 = vld [vmem:[#allocation2 + $0x58] sm:$0xff]
        %v730 = vld [vmem:[#allocation2 + $0x60] sm:$0xff]
        %v731 = vld [vmem:[#allocation2 + $0x68] sm:$0xff]
        %v732 = vld [vmem:[#allocation2 + $0x70] sm:$0xff]
        %v733 = vld [vmem:[#allocation2 + $0x78] sm:$0xff]
        %v734 = vld [vmem:[#allocation2 + $0x80] sm:$0xff]
        %v735 = vld [vmem:[#allocation2 + $0x88] sm:$0xff]
        %v736 = vld [vmem:[#allocation2 + $0x90] sm:$0xff]
        %v737 = vld [vmem:[#allocation2 + $0x98] sm:$0xff]
        %v738 = vld [vmem:[#allocation2 + $0xa0] sm:$0xff]
        %v739 = vld [vmem:[#allocation2 + $0xa8] sm:$0xff]
        %v740 = vld [vmem:[#allocation2 + $0xb0] sm:$0xff]
        %v741 = vld [vmem:[#allocation2 + $0xb8] sm:$0xff]
        %v742 = vld [vmem:[#allocation2 + $0xc0] sm:$0xff]
        %v743 = vld [vmem:[#allocation2 + $0xc8] sm:$0xff]
        %v744 = vld [vmem:[#allocation2 + $0xd0] sm:$0xff]
        %v745 = vld [vmem:[#allocation2 + $0xd8] sm:$0xff]
        %v746 = vld [vmem:[#allocation2 + $0xe0] sm:$0xff]
        %v747 = vld [vmem:[#allocation2 + $0xe8] sm:$0xff]
        %v748 = vld [vmem:[#allocation2 + $0xf0] sm:$0xff]
        %v749 = vld [vmem:[#allocation2 + $0xf8] sm:$0xff]
        %750 = vst.msk [vmem:[%s216] sm:$0xff] %vm682, %v718
        %751 = vst.msk [vmem:[%s216 + $0x8] sm:$0xff] %vm682, %v719
        %752 = vst.msk [vmem:[%s216 + $0x10] sm:$0xff] %vm682, %v720
        %753 = vst.msk [vmem:[%s216 + $0x18] sm:$0xff] %vm682, %v721
        %754 = vst.msk [vmem:[%s216 + $0x20] sm:$0xff] %vm682, %v722
        %755 = vst.msk [vmem:[%s216 + $0x28] sm:$0xff] %vm682, %v723
        %756 = vst.msk [vmem:[%s216 + $0x30] sm:$0xff] %vm682, %v724
        %757 = vst.msk [vmem:[%s216 + $0x38] sm:$0xff] %vm682, %v725
        %758 = vst.msk [vmem:[%s216 + $0x40] sm:$0xff] %vm682, %v726
        %759 = vst.msk [vmem:[%s216 + $0x48] sm:$0xff] %vm682, %v727
        %760 = vst.msk [vmem:[%s216 + $0x50] sm:$0xff] %vm682, %v728
        %761 = vst.msk [vmem:[%s216 + $0x58] sm:$0xff] %vm682, %v729
        %762 = vst.msk [vmem:[%s216 + $0x60] sm:$0xff] %vm682, %v730
        %763 = vst.msk [vmem:[%s216 + $0x68] sm:$0xff] %vm682, %v731
        %764 = vst.msk [vmem:[%s216 + $0x70] sm:$0xff] %vm682, %v732
        %765 = vst.msk [vmem:[%s216 + $0x78] sm:$0xff] %vm682, %v733
        %766 = vst.msk [vmem:[%s216 + $0x80] sm:$0xff] %vm682, %v734
        %767 = vst.msk [vmem:[%s216 + $0x88] sm:$0xff] %vm682, %v735
        %768 = vst.msk [vmem:[%s216 + $0x90] sm:$0xff] %vm682, %v736
        %769 = vst.msk [vmem:[%s216 + $0x98] sm:$0xff] %vm682, %v737
        %770 = vst.msk [vmem:[%s216 + $0xa0] sm:$0xff] %vm682, %v738
        %771 = vst.msk [vmem:[%s216 + $0xa8] sm:$0xff] %vm682, %v739
        %772 = vst.msk [vmem:[%s216 + $0xb0] sm:$0xff] %vm682, %v740
        %773 = vst.msk [vmem:[%s216 + $0xb8] sm:$0xff] %vm682, %v741
        %774 = vst.msk [vmem:[%s216 + $0xc0] sm:$0xff] %vm682, %v742
        %775 = vst.msk [vmem:[%s216 + $0xc8] sm:$0xff] %vm682, %v743
        %776 = vst.msk [vmem:[%s216 + $0xd0] sm:$0xff] %vm682, %v744
        %777 = vst.msk [vmem:[%s216 + $0xd8] sm:$0xff] %vm682, %v745
        %778 = vst.msk [vmem:[%s216 + $0xe0] sm:$0xff] %vm682, %v746
        %779 = vst.msk [vmem:[%s216 + $0xe8] sm:$0xff] %vm682, %v747
        %780 = vst.msk [vmem:[%s216 + $0xf0] sm:$0xff] %vm682, %v748
        %781 = vst.msk [vmem:[%s216 + $0xf8] sm:$0xff] %vm682, %v749
      $region36: #{conv2d_pallas.1} parent=27 // pred_fallthru
        _
      %s782 = smul.u32 32, %s18
      %p783 = scmp.lt.s32.totalorder %s782, 63
      %s784 = scalar_select %p783, %s782, 63
      %p785 = scmp.lt.s32.totalorder %s19, 0
      %s786 = scalar_select %p785, %s19, 0
      %s787 = sadd.s32 %s786, %s784
      %s788 = smul.addr %s787, 8
      %s789 = scalar_lea.vmem %s2, %s788
      // Predicated region
      $region37: #{conv2d_pallas.1} parent=27 // pred_check
        %p790 = pneg %p108
      $region38: #{conv2d_pallas.1} parent=27 // pred_check_branch
        %792 = sbr.rel (%p790) target = $region40
      $region39: #{conv2d_pallas.1} parent=27 // pred_region
        %s793 = smul.u32 32, %s18
      $region40: #{conv2d_pallas.1} parent=27 // pred_fallthru
        _
    $region28: #{conv2d_pallas.1} parent=5 // pred_fallthru
      _
    %p794 = scmp.le.s32.totalorder 2, %s8
    // Predicated region
    $region41: #{conv2d_pallas.1} parent=5 // pred_check
      %p795 = pneg %p794
    $region42: #{conv2d_pallas.1} parent=5 // pred_check_branch
      %797 = sbr.rel (%p795) target = $region44
    $region43: #{conv2d_pallas.1} parent=5 // pred_region
      %s798 = ssub.s32 %s8, 2
      // Predicated region
      $region45: #{conv2d_pallas.1} parent=43 // pred_check
        %p799 = pneg %p114
      $region46: #{conv2d_pallas.1} parent=43 // pred_check_branch
        %801 = sbr.rel (%p799) target = $region48
      $region47: #{conv2d_pallas.1} parent=43 // pred_region
        %s802 = smul.u32 32, %s21
        %p803 = scmp.lt.s32.totalorder %s802, 63
        %s804 = scalar_select %p803, %s802, 63
        %p805 = scmp.lt.s32.totalorder %s22, 0
        %s806 = scalar_select %p805, %s22, 0
        %s807 = sadd.s32 %s806, %s804
        %s808 = smul.addr %s807, 8
        %s809 = scalar_lea.vmem %s2, %s808
      $region48: #{conv2d_pallas.1} parent=43 // pred_fallthru
        _
    $region44: #{conv2d_pallas.1} parent=5 // pred_fallthru
      _
  $region6: #{conv2d_pallas.1} parent=0 // loop_footer
    %s12 = sadd.s32 1, %s8
  $region7: #{conv2d_pallas.1} parent=0 // loop_footer_branch
    %7 = sbr.rel target = $region3
  $region8: #{conv2d_pallas.1} parent=0 // loop_exit
    _

</llo_original>
